<compile_context>
chip_gen: v5e
topology: v5e:2x2
jax: 0.10.0
libtpu: 0.0.40
codegen_flags: <defaults>
</compile_context>

<pallas_src>
import functools

import jax
import jax.numpy as jnp
import numpy as np
from jax.experimental import pallas as pl
from jax.experimental.pallas import tpu as pltpu


def _round_up(x: int, m: int) -> int:
    return ((x + m - 1) // m) * m


def _choose_time_chunk(T: int, tc_cap: int) -> int:
    """Largest chunk <= tc_cap, preferring an exact divisor of T (no padded steps)."""
    tc_cap = max(1, min(tc_cap, T))
    for tc in range(tc_cap, 0, -1):
        if T % tc == 0:
            if 2 * tc >= tc_cap:      # exact divisor close enough to the cap
                return tc
            break
    return tc_cap                      # fall back to padding the tail chunk


def _rnn_kernel(x_ref, h0_ref, wxh_ref, whh_ref, bh_ref, out_ref,
                h_scratch, xp_scratch, *, chunk):
    """One grid step = `chunk` timesteps of the recurrence for one batch block.

    x_ref   : (Tc, Bblk, I)   raw inputs for this chunk (time-major)
    h0_ref  : (Bblk, Hp)      initial hidden state for this batch block
    wxh_ref : (I, Hp)         input weights   (constant-index, resident)
    whh_ref : (Hp, Hp)        recurrent weights (constant-index, resident)
    bh_ref  : (1, Hp) f32     bias
    out_ref : (Tc, Bblk, Hp)  hidden states for this chunk
    h_scratch : (Bblk, Hp) f32       hidden state carried across time chunks
    xp_scratch: (Tc, Bblk, Hp) f32   per-chunk input projection
    """
    t_chunk = pl.program_id(1)

    # Re-initialize the carried hidden state at the start of every batch block.
    @pl.when(t_chunk == 0)
    def _():
        h_scratch[...] = h0_ref[...].astype(jnp.float32)

    tc, bb, i_sz = x_ref.shape
    hp = whh_ref.shape[1]
    mxu_dtype = whh_ref.dtype   # f32 (exact) or bf16 (fast MXU input)

    # Fused input projection: ONE MXU matmul for the whole chunk,
    # (Tc*Bblk, I) @ (I, Hp) + bh, accumulated in f32.
    x_flat = x_ref[...].astype(mxu_dtype).reshape(tc * bb, i_sz)
    xp = jnp.dot(x_flat, wxh_ref[...], preferred_element_type=jnp.float32)
    xp = xp + bh_ref[...]
    xp_scratch[...] = xp.reshape(tc, bb, hp)

    def step(i, h):
        hw = jnp.dot(h.astype(mxu_dtype), whh_ref[...],
                     preferred_element_type=jnp.float32)
        h_new = jnp.tanh(xp_scratch[i] + hw)
        out_ref[i] = h_new.astype(out_ref.dtype)
        return h_new

    h_final = jax.lax.fori_loop(0, chunk, step, h_scratch[...],
                                unroll=min(8, chunk))
    h_scratch[...] = h_final


def rnn_layer_forward(x, wxh, whh, bh, h0=None, *, param_dtype=None,
                      vmem_budget_bytes=32 * 1024 * 1024):
    """x: (B, T, I) -> output (B, T, H), matching the PyTorch RNNLayer."""
    B, T, I = x.shape
    H = wxh.shape[1]
    out_dtype = x.dtype
    param_dtype = jnp.dtype(param_dtype) if param_dtype is not None else jnp.dtype(jnp.float32)
    f32 = jnp.float32

    # Lane-dense hidden dim, sublane-dense batch blocks.
    Hp = _round_up(max(H, 128), 128)
    Bblk = min(_round_up(B, 8), 128)
    Bp = _round_up(B, Bblk)

    # --- VMEM budget -> time-chunk size (double buffering of pipelined blocks). ---
    pbytes = param_dtype.itemsize
    xbytes = jnp.dtype(x.dtype).itemsize
    obytes = jnp.dtype(out_dtype).itemsize
    fixed = (2 * I * Hp * pbytes          # Wxh
             + 2 * Hp * Hp * pbytes       # Whh
             + 2 * Hp * 4                 # bh (f32)
             + 2 * Bblk * Hp * 4          # h0
             + Bblk * Hp * 4)             # carried-hidden scratch
    per_t = Bblk * (2 * I * xbytes        # x chunk (x2 buffers)
                    + 2 * Hp * obytes     # out chunk (x2 buffers)
                    + Hp * 4)             # xp scratch
    if vmem_budget_bytes > fixed:
        tc_cap = int(max(1, (vmem_budget_bytes - fixed) // per_t))
    else:
        tc_cap = 1
    tc_cap = min(tc_cap, 128)
    Tc = _choose_time_chunk(T, tc_cap)
    T_pad = _round_up(T, Tc)

    vmem_used = fixed + Tc * per_t
    vmem_limit = int(min(max(vmem_used + (4 << 20), 32 << 20), 64 << 20))

    # Zero-pad parameters along hidden/batch dims.  Padded lanes of h stay
    # exactly 0 (tanh(0)=0, padded rows/cols of Whh are 0), so they never
    # contaminate real lanes.
    wxh_p = jnp.zeros((I, Hp), param_dtype).at[:, :H].set(wxh.astype(param_dtype))
    whh_p = jnp.zeros((Hp, Hp), param_dtype).at[:H, :H].set(whh.astype(param_dtype))
    bh_p = jnp.zeros((1, Hp), f32).at[0, :H].set(bh.astype(f32))
    if h0 is None:
        h0_p = jnp.zeros((Bp, Hp), f32)
    else:
        h0_p = jnp.zeros((Bp, Hp), f32).at[:B, :H].set(h0.astype(f32))

    # Raw input, time-major and padded (small copy; replaces the old f32
    # xp=(T,B,Hp) HBM intermediate entirely).
    x_tm = jnp.zeros((T_pad, Bp, I), x.dtype).at[:T, :B, :].set(
        jnp.transpose(x, (1, 0, 2)))

    grid = (Bp // Bblk, T_pad // Tc)   # (parallel batch blocks, serial time chunks)

    out_tm = pl.pallas_call(
        functools.partial(_rnn_kernel, chunk=Tc),
        out_shape=jax.ShapeDtypeStruct((T_pad, Bp, Hp), out_dtype),
        grid_spec=pltpu.PrefetchScalarGridSpec(
            num_scalar_prefetch=0,
            grid=grid,
            in_specs=[
                pl.BlockSpec((Tc, Bblk, I), lambda b, c: (c, b, 0)),   # x chunk
                pl.BlockSpec((Bblk, Hp), lambda b, c: (b, 0)),         # h0
                pl.BlockSpec((I, Hp), lambda b, c: (0, 0)),            # Wxh (resident)
                pl.BlockSpec((Hp, Hp), lambda b, c: (0, 0)),           # Whh (resident)
                pl.BlockSpec((1, Hp), lambda b, c: (0, 0)),            # bh  (resident)
            ],
            out_specs=pl.BlockSpec((Tc, Bblk, Hp), lambda b, c: (c, b, 0)),
            scratch_shapes=[
                pltpu.VMEM((Bblk, Hp), jnp.float32),      # carried hidden state
                pltpu.VMEM((Tc, Bblk, Hp), jnp.float32),  # per-chunk projection
            ],
        ),
        compiler_params=pltpu.CompilerParams(
            dimension_semantics=("parallel", "arbitrary"),
            vmem_limit_bytes=vmem_limit,
        ),
    )(x_tm, h0_p, wxh_p, whh_p, bh_p)

    # Slice off time/batch/hidden padding, return in PyTorch (B, T, H) layout.
    return jnp.transpose(out_tm[:T, :B, :H], (1, 0, 2))


def rnn_layer_reference(x, wxh, whh, bh, h0=None):
    """Pure-JAX reference mirroring the PyTorch loop (high-precision matmuls)."""
    B, T, I = x.shape
    H = wxh.shape[1]
    prec = jax.lax.Precision.HIGHEST
    f32 = jnp.float32
    h = jnp.zeros((B, H), f32) if h0 is None else h0.astype(f32)
    wxh32, whh32, bh32 = wxh.astype(f32), whh.astype(f32), bh.astype(f32)
    hs = []
    for t in range(T):
        pre = (jnp.dot(x[:, t, :].astype(f32), wxh32, precision=prec)
               + jnp.dot(h, whh32, precision=prec) + bh32)
        h = jnp.tanh(pre)
        hs.append(h[:, None, :])
    return jnp.concatenate(hs, axis=1).astype(x.dtype)


if __name__ == "__main__":
    # Small shapes consistent with RNNLayer(input_size=4, hidden_size=32)
    batch, seq_len, input_size, hidden_size = 2, 8, 4, 32

    key = jax.random.PRNGKey(0)
    k_x, k_wxh, k_whh = jax.random.split(key, 3)

    # Deterministic parameter init (mirrors torch.randn / zeros in _reset_parameter).
    wxh = jax.random.normal(k_wxh, (input_size, hidden_size), dtype=jnp.float32)
    whh = jax.random.normal(k_whh, (hidden_size, hidden_size), dtype=jnp.float32)
    bh = jnp.zeros((hidden_size,), dtype=jnp.float32)
    x = jax.random.normal(k_x, (batch, seq_len, input_size), dtype=jnp.float32)

    out = jax.block_until_ready(rnn_layer_forward(x, wxh, whh, bh))
    ref = rnn_layer_reference(x, wxh, whh, bh)

    assert out.shape == (batch, seq_len, hidden_size)
    np.testing.assert_allclose(np.asarray(out), np.asarray(ref), rtol=1e-4, atol=1e-4)

    print("KERNEL_OK")
</pallas_src>

<mosaic_0001>
module attributes {stable_mosaic.version = 11 : i64} {
  func.func @_rnn_kernel(%arg0: i32, %arg1: i32, %arg2: memref<8x8x4xf32, #tpu.memory_space<vmem>>, %arg3: memref<8x128xf32, #tpu.memory_space<vmem>>, %arg4: memref<4x128xf32, #tpu.memory_space<vmem>>, %arg5: memref<128x128xf32, #tpu.memory_space<vmem>>, %arg6: memref<1x128xf32, #tpu.memory_space<vmem>>, %arg7: memref<8x8x128xf32, #tpu.memory_space<vmem>>, %arg8: memref<8x128xf32, #tpu.memory_space<vmem>>, %arg9: memref<8x8x128xf32, #tpu.memory_space<vmem>>) attributes {dimension_semantics = [#tpu.dimension_semantics<parallel>, #tpu.dimension_semantics<arbitrary>], iteration_bounds = array<i64: 1, 1>, scalar_prefetch = 0 : i64, scratch_operands = 2 : i64, tpu.core_type = #tpu.core_type<tc>, window_params = [{transform_indices = @transform_0, window_bounds = array<i64: 8, 8, 4>}, {transform_indices = @transform_1, window_bounds = array<i64: 8, 128>}, {pipeline_mode = #tpu.pipeline_mode<synchronous>, transform_indices = @transform_2, window_bounds = array<i64: 4, 128>}, {pipeline_mode = #tpu.pipeline_mode<synchronous>, transform_indices = @transform_3, window_bounds = array<i64: 128, 128>}, {pipeline_mode = #tpu.pipeline_mode<synchronous>, transform_indices = @transform_4, window_bounds = array<i64: 1, 128>}, {transform_indices = @transform_5, window_bounds = array<i64: 8, 8, 128>}]} {
    %c0_i32 = arith.constant 0 : i32
    %0 = arith.cmpi eq, %arg1, %c0_i32 : i32
    %1 = arith.extui %0 : i1 to i32
    %c0_i32_0 = arith.constant 0 : i32
    %2 = arith.cmpi ne, %1, %c0_i32_0 : i32
    scf.if %2 {
      %c0_71 = arith.constant 0 : index
      %c0_72 = arith.constant 0 : index
      %102 = vector.load %arg3[%c0_71, %c0_72] : memref<8x128xf32, #tpu.memory_space<vmem>>, vector<8x128xf32>
      %c0_73 = arith.constant 0 : index
      %c0_74 = arith.constant 0 : index
      %103 = vector.load %arg8[%c0_73, %c0_74] : memref<8x128xf32, #tpu.memory_space<vmem>>, vector<8x128xf32>
      tpu.vector_store %arg8[%c0_73, %c0_74], %102 {strides = array<i32>} : memref<8x128xf32, #tpu.memory_space<vmem>>, vector<8x128xf32>,
    } else {
    }
    %c0 = arith.constant 0 : index
    %c0_1 = arith.constant 0 : index
    %c0_2 = arith.constant 0 : index
    %3 = vector.load %arg2[%c0, %c0_1, %c0_2] : memref<8x8x4xf32, #tpu.memory_space<vmem>>, vector<8x8x4xf32>
    %4 = vector.shape_cast %3 : vector<8x8x4xf32> to vector<64x4xf32>
    %c0_3 = arith.constant 0 : index
    %c0_4 = arith.constant 0 : index
    %5 = vector.load %arg4[%c0_3, %c0_4] : memref<4x128xf32, #tpu.memory_space<vmem>>, vector<4x128xf32>
    %cst = arith.constant dense<0.000000e+00> : vector<64x128xf32>
    %6 = tpu.matmul %4, %5, %cst {dimension_numbers = #tpu.dot_dimension_numbers<[1], [0], [0], [1], [0, 0, 1, 1], [], []>} : vector<64x4xf32>, vector<4x128xf32>, vector<64x128xf32> -> vector<64x128xf32>
    %c0_5 = arith.constant 0 : index
    %c0_6 = arith.constant 0 : index
    %7 = vector.load %arg6[%c0_5, %c0_6] : memref<1x128xf32, #tpu.memory_space<vmem>>, vector<1x128xf32>
    %8 = vector.broadcast %7 : vector<1x128xf32> to vector<64x128xf32>
    %9 = arith.addf %6, %8 : vector<64x128xf32>
    %10 = vector.shape_cast %9 : vector<64x128xf32> to vector<8x8x128xf32>
    %c0_7 = arith.constant 0 : index
    %c0_8 = arith.constant 0 : index
    %c0_9 = arith.constant 0 : index
    %11 = vector.load %arg9[%c0_7, %c0_8, %c0_9] : memref<8x8x128xf32, #tpu.memory_space<vmem>>, vector<8x8x128xf32>
    tpu.vector_store %arg9[%c0_7, %c0_8, %c0_9], %10 {strides = array<i32>} : memref<8x8x128xf32, #tpu.memory_space<vmem>>, vector<8x8x128xf32>,
    %c0_10 = arith.constant 0 : index
    %c0_11 = arith.constant 0 : index
    %12 = vector.load %arg8[%c0_10, %c0_11] : memref<8x128xf32, #tpu.memory_space<vmem>>, vector<8x128xf32>
    %c0_i32_12 = arith.constant 0 : i32
    %c0_13 = arith.constant 0 : index
    %c0_14 = arith.constant 0 : index
    %13 = vector.load %arg5[%c0_13, %c0_14] : memref<128x128xf32, #tpu.memory_space<vmem>>, vector<128x128xf32>
    %cst_15 = arith.constant dense<0.000000e+00> : vector<8x128xf32>
    %14 = tpu.matmul %12, %13, %cst_15 {dimension_numbers = #tpu.dot_dimension_numbers<[1], [0], [0], [1], [0, 0, 1, 1], [], []>} : vector<8x128xf32>, vector<128x128xf32>, vector<8x128xf32> -> vector<8x128xf32>
    %15 = arith.index_cast %c0_i32_12 : i32 to index
    %c0_16 = arith.constant 0 : index
    %c0_17 = arith.constant 0 : index
    %16 = vector.load %arg9[%15, %c0_16, %c0_17] : memref<8x8x128xf32, #tpu.memory_space<vmem>>, vector<1x8x128xf32>
    %17 = vector.shape_cast %16 : vector<1x8x128xf32> to vector<8x128xf32>
    %18 = arith.addf %17, %14 : vector<8x128xf32>
    %19 = math.tanh %18 : vector<8x128xf32>
    %20 = arith.index_cast %c0_i32_12 : i32 to index
    %c0_18 = arith.constant 0 : index
    %c0_19 = arith.constant 0 : index
    %21 = vector.load %arg7[%20, %c0_18, %c0_19] : memref<8x8x128xf32, #tpu.memory_space<vmem>>, vector<1x8x128xf32>
    %22 = vector.shape_cast %21 : vector<1x8x128xf32> to vector<8x128xf32>
    %23 = vector.shape_cast %19 : vector<8x128xf32> to vector<1x8x128xf32>
    tpu.vector_store %arg7[%20, %c0_18, %c0_19], %23 {strides = array<i32>} : memref<8x8x128xf32, #tpu.memory_space<vmem>>, vector<1x8x128xf32>,
    %c1_i32 = arith.constant 1 : i32
    %c0_20 = arith.constant 0 : index
    %c0_21 = arith.constant 0 : index
    %24 = vector.load %arg5[%c0_20, %c0_21] : memref<128x128xf32, #tpu.memory_space<vmem>>, vector<128x128xf32>
    %cst_22 = arith.constant dense<0.000000e+00> : vector<8x128xf32>
    %25 = tpu.matmul %19, %24, %cst_22 {dimension_numbers = #tpu.dot_dimension_numbers<[1], [0], [0], [1], [0, 0, 1, 1], [], []>} : vector<8x128xf32>, vector<128x128xf32>, vector<8x128xf32> -> vector<8x128xf32>
    %26 = arith.index_cast %c1_i32 : i32 to index
    %c0_23 = arith.constant 0 : index
    %c0_24 = arith.constant 0 : index
    %27 = vector.load %arg9[%26, %c0_23, %c0_24] : memref<8x8x128xf32, #tpu.memory_space<vmem>>, vector<1x8x128xf32>
    %28 = vector.shape_cast %27 : vector<1x8x128xf32> to vector<8x128xf32>
    %29 = arith.addf %28, %25 : vector<8x128xf32>
    %30 = math.tanh %29 : vector<8x128xf32>
    %31 = arith.index_cast %c1_i32 : i32 to index
    %c0_25 = arith.constant 0 : index
    %c0_26 = arith.constant 0 : index
    %32 = vector.load %arg7[%31, %c0_25, %c0_26] : memref<8x8x128xf32, #tpu.memory_space<vmem>>, vector<1x8x128xf32>
    %33 = vector.shape_cast %32 : vector<1x8x128xf32> to vector<8x128xf32>
    %34 = vector.shape_cast %30 : vector<8x128xf32> to vector<1x8x128xf32>
    tpu.vector_store %arg7[%31, %c0_25, %c0_26], %34 {strides = array<i32>} : memref<8x8x128xf32, #tpu.memory_space<vmem>>, vector<1x8x128xf32>,
    %c2_i32 = arith.constant 2 : i32
    %c0_27 = arith.constant 0 : index
    %c0_28 = arith.constant 0 : index
    %35 = vector.load %arg5[%c0_27, %c0_28] : memref<128x128xf32, #tpu.memory_space<vmem>>, vector<128x128xf32>
    %cst_29 = arith.constant dense<0.000000e+00> : vector<8x128xf32>
    %36 = tpu.matmul %30, %35, %cst_29 {dimension_numbers = #tpu.dot_dimension_numbers<[1], [0], [0], [1], [0, 0, 1, 1], [], []>} : vector<8x128xf32>, vector<128x128xf32>, vector<8x128xf32> -> vector<8x128xf32>
    %37 = arith.index_cast %c2_i32 : i32 to index
    %c0_30 = arith.constant 0 : index
    %c0_31 = arith.constant 0 : index
    %38 = vector.load %arg9[%37, %c0_30, %c0_31] : memref<8x8x128xf32, #tpu.memory_space<vmem>>, vector<1x8x128xf32>
    %39 = vector.shape_cast %38 : vector<1x8x128xf32> to vector<8x128xf32>
    %40 = arith.addf %39, %36 : vector<8x128xf32>
    %41 = math.tanh %40 : vector<8x128xf32>
    %42 = arith.index_cast %c2_i32 : i32 to index
    %c0_32 = arith.constant 0 : index
    %c0_33 = arith.constant 0 : index
    %43 = vector.load %arg7[%42, %c0_32, %c0_33] : memref<8x8x128xf32, #tpu.memory_space<vmem>>, vector<1x8x128xf32>
    %44 = vector.shape_cast %43 : vector<1x8x128xf32> to vector<8x128xf32>
    %45 = vector.shape_cast %41 : vector<8x128xf32> to vector<1x8x128xf32>
    tpu.vector_store %arg7[%42, %c0_32, %c0_33], %45 {strides = array<i32>} : memref<8x8x128xf32, #tpu.memory_space<vmem>>, vector<1x8x128xf32>,
    %c3_i32 = arith.constant 3 : i32
    %c0_34 = arith.constant 0 : index
    %c0_35 = arith.constant 0 : index
    %46 = vector.load %arg5[%c0_34, %c0_35] : memref<128x128xf32, #tpu.memory_space<vmem>>, vector<128x128xf32>
    %cst_36 = arith.constant dense<0.000000e+00> : vector<8x128xf32>
    %47 = tpu.matmul %41, %46, %cst_36 {dimension_numbers = #tpu.dot_dimension_numbers<[1], [0], [0], [1], [0, 0, 1, 1], [], []>} : vector<8x128xf32>, vector<128x128xf32>, vector<8x128xf32> -> vector<8x128xf32>
    %48 = arith.index_cast %c3_i32 : i32 to index
    %c0_37 = arith.constant 0 : index
    %c0_38 = arith.constant 0 : index
    %49 = vector.load %arg9[%48, %c0_37, %c0_38] : memref<8x8x128xf32, #tpu.memory_space<vmem>>, vector<1x8x128xf32>
    %50 = vector.shape_cast %49 : vector<1x8x128xf32> to vector<8x128xf32>
    %51 = arith.addf %50, %47 : vector<8x128xf32>
    %52 = math.tanh %51 : vector<8x128xf32>
    %53 = arith.index_cast %c3_i32 : i32 to index
    %c0_39 = arith.constant 0 : index
    %c0_40 = arith.constant 0 : index
    %54 = vector.load %arg7[%53, %c0_39, %c0_40] : memref<8x8x128xf32, #tpu.memory_space<vmem>>, vector<1x8x128xf32>
    %55 = vector.shape_cast %54 : vector<1x8x128xf32> to vector<8x128xf32>
    %56 = vector.shape_cast %52 : vector<8x128xf32> to vector<1x8x128xf32>
    tpu.vector_store %arg7[%53, %c0_39, %c0_40], %56 {strides = array<i32>} : memref<8x8x128xf32, #tpu.memory_space<vmem>>, vector<1x8x128xf32>,
    %c4_i32 = arith.constant 4 : i32
    %c0_41 = arith.constant 0 : index
    %c0_42 = arith.constant 0 : index
    %57 = vector.load %arg5[%c0_41, %c0_42] : memref<128x128xf32, #tpu.memory_space<vmem>>, vector<128x128xf32>
    %cst_43 = arith.constant dense<0.000000e+00> : vector<8x128xf32>
    %58 = tpu.matmul %52, %57, %cst_43 {dimension_numbers = #tpu.dot_dimension_numbers<[1], [0], [0], [1], [0, 0, 1, 1], [], []>} : vector<8x128xf32>, vector<128x128xf32>, vector<8x128xf32> -> vector<8x128xf32>
    %59 = arith.index_cast %c4_i32 : i32 to index
    %c0_44 = arith.constant 0 : index
    %c0_45 = arith.constant 0 : index
    %60 = vector.load %arg9[%59, %c0_44, %c0_45] : memref<8x8x128xf32, #tpu.memory_space<vmem>>, vector<1x8x128xf32>
    %61 = vector.shape_cast %60 : vector<1x8x128xf32> to vector<8x128xf32>
    %62 = arith.addf %61, %58 : vector<8x128xf32>
    %63 = math.tanh %62 : vector<8x128xf32>
    %64 = arith.index_cast %c4_i32 : i32 to index
    %c0_46 = arith.constant 0 : index
    %c0_47 = arith.constant 0 : index
    %65 = vector.load %arg7[%64, %c0_46, %c0_47] : memref<8x8x128xf32, #tpu.memory_space<vmem>>, vector<1x8x128xf32>
    %66 = vector.shape_cast %65 : vector<1x8x128xf32> to vector<8x128xf32>
    %67 = vector.shape_cast %63 : vector<8x128xf32> to vector<1x8x128xf32>
    tpu.vector_store %arg7[%64, %c0_46, %c0_47], %67 {strides = array<i32>} : memref<8x8x128xf32, #tpu.memory_space<vmem>>, vector<1x8x128xf32>,
    %c5_i32 = arith.constant 5 : i32
    %c0_48 = arith.constant 0 : index
    %c0_49 = arith.constant 0 : index
    %68 = vector.load %arg5[%c0_48, %c0_49] : memref<128x128xf32, #tpu.memory_space<vmem>>, vector<128x128xf32>
    %cst_50 = arith.constant dense<0.000000e+00> : vector<8x128xf32>
    %69 = tpu.matmul %63, %68, %cst_50 {dimension_numbers = #tpu.dot_dimension_numbers<[1], [0], [0], [1], [0, 0, 1, 1], [], []>} : vector<8x128xf32>, vector<128x128xf32>, vector<8x128xf32> -> vector<8x128xf32>
    %70 = arith.index_cast %c5_i32 : i32 to index
    %c0_51 = arith.constant 0 : index
    %c0_52 = arith.constant 0 : index
    %71 = vector.load %arg9[%70, %c0_51, %c0_52] : memref<8x8x128xf32, #tpu.memory_space<vmem>>, vector<1x8x128xf32>
    %72 = vector.shape_cast %71 : vector<1x8x128xf32> to vector<8x128xf32>
    %73 = arith.addf %72, %69 : vector<8x128xf32>
    %74 = math.tanh %73 : vector<8x128xf32>
    %75 = arith.index_cast %c5_i32 : i32 to index
    %c0_53 = arith.constant 0 : index
    %c0_54 = arith.constant 0 : index
    %76 = vector.load %arg7[%75, %c0_53, %c0_54] : memref<8x8x128xf32, #tpu.memory_space<vmem>>, vector<1x8x128xf32>
    %77 = vector.shape_cast %76 : vector<1x8x128xf32> to vector<8x128xf32>
    %78 = vector.shape_cast %74 : vector<8x128xf32> to vector<1x8x128xf32>
    tpu.vector_store %arg7[%75, %c0_53, %c0_54], %78 {strides = array<i32>} : memref<8x8x128xf32, #tpu.memory_space<vmem>>, vector<1x8x128xf32>,
    %c6_i32 = arith.constant 6 : i32
    %c0_55 = arith.constant 0 : index
    %c0_56 = arith.constant 0 : index
    %79 = vector.load %arg5[%c0_55, %c0_56] : memref<128x128xf32, #tpu.memory_space<vmem>>, vector<128x128xf32>
    %cst_57 = arith.constant dense<0.000000e+00> : vector<8x128xf32>
    %80 = tpu.matmul %74, %79, %cst_57 {dimension_numbers = #tpu.dot_dimension_numbers<[1], [0], [0], [1], [0, 0, 1, 1], [], []>} : vector<8x128xf32>, vector<128x128xf32>, vector<8x128xf32> -> vector<8x128xf32>
    %81 = arith.index_cast %c6_i32 : i32 to index
    %c0_58 = arith.constant 0 : index
    %c0_59 = arith.constant 0 : index
    %82 = vector.load %arg9[%81, %c0_58, %c0_59] : memref<8x8x128xf32, #tpu.memory_space<vmem>>, vector<1x8x128xf32>
    %83 = vector.shape_cast %82 : vector<1x8x128xf32> to vector<8x128xf32>
    %84 = arith.addf %83, %80 : vector<8x128xf32>
    %85 = math.tanh %84 : vector<8x128xf32>
    %86 = arith.index_cast %c6_i32 : i32 to index
    %c0_60 = arith.constant 0 : index
    %c0_61 = arith.constant 0 : index
    %87 = vector.load %arg7[%86, %c0_60, %c0_61] : memref<8x8x128xf32, #tpu.memory_space<vmem>>, vector<1x8x128xf32>
    %88 = vector.shape_cast %87 : vector<1x8x128xf32> to vector<8x128xf32>
    %89 = vector.shape_cast %85 : vector<8x128xf32> to vector<1x8x128xf32>
    tpu.vector_store %arg7[%86, %c0_60, %c0_61], %89 {strides = array<i32>} : memref<8x8x128xf32, #tpu.memory_space<vmem>>, vector<1x8x128xf32>,
    %c7_i32 = arith.constant 7 : i32
    %c0_62 = arith.constant 0 : index
    %c0_63 = arith.constant 0 : index
    %90 = vector.load %arg5[%c0_62, %c0_63] : memref<128x128xf32, #tpu.memory_space<vmem>>, vector<128x128xf32>
    %cst_64 = arith.constant dense<0.000000e+00> : vector<8x128xf32>
    %91 = tpu.matmul %85, %90, %cst_64 {dimension_numbers = #tpu.dot_dimension_numbers<[1], [0], [0], [1], [0, 0, 1, 1], [], []>} : vector<8x128xf32>, vector<128x128xf32>, vector<8x128xf32> -> vector<8x128xf32>
    %92 = arith.index_cast %c7_i32 : i32 to index
    %c0_65 = arith.constant 0 : index
    %c0_66 = arith.constant 0 : index
    %93 = vector.load %arg9[%92, %c0_65, %c0_66] : memref<8x8x128xf32, #tpu.memory_space<vmem>>, vector<1x8x128xf32>
    %94 = vector.shape_cast %93 : vector<1x8x128xf32> to vector<8x128xf32>
    %95 = arith.addf %94, %91 : vector<8x128xf32>
    %96 = math.tanh %95 : vector<8x128xf32>
    %97 = arith.index_cast %c7_i32 : i32 to index
    %c0_67 = arith.constant 0 : index
    %c0_68 = arith.constant 0 : index
    %98 = vector.load %arg7[%97, %c0_67, %c0_68] : memref<8x8x128xf32, #tpu.memory_space<vmem>>, vector<1x8x128xf32>
    %99 = vector.shape_cast %98 : vector<1x8x128xf32> to vector<8x128xf32>
    %100 = vector.shape_cast %96 : vector<8x128xf32> to vector<1x8x128xf32>
    tpu.vector_store %arg7[%97, %c0_67, %c0_68], %100 {strides = array<i32>} : memref<8x8x128xf32, #tpu.memory_space<vmem>>, vector<1x8x128xf32>,
    %c8_i32 = arith.constant 8 : i32
    %c0_69 = arith.constant 0 : index
    %c0_70 = arith.constant 0 : index
    %101 = vector.load %arg8[%c0_69, %c0_70] : memref<8x128xf32, #tpu.memory_space<vmem>>, vector<8x128xf32>
    tpu.vector_store %arg8[%c0_69, %c0_70], %96 {strides = array<i32>} : memref<8x128xf32, #tpu.memory_space<vmem>>, vector<8x128xf32>,
    return
  }
  func.func @transform_0(%arg0: i32, %arg1: i32) -> (i32, i32, i32) {
    %c0_i32 = arith.constant 0 : i32
    %c0_i32_0 = arith.constant 0 : i32
    return %arg1, %arg0, %c0_i32 : i32, i32, i32
  }
  func.func @transform_1(%arg0: i32, %arg1: i32) -> (i32, i32) {
    %c0_i32 = arith.constant 0 : i32
    %c0_i32_0 = arith.constant 0 : i32
    return %arg0, %c0_i32 : i32, i32
  }
  func.func @transform_2(%arg0: i32, %arg1: i32) -> (i32, i32) {
    %c0_i32 = arith.constant 0 : i32
    %c0_i32_0 = arith.constant 0 : i32
    %c0_i32_1 = arith.constant 0 : i32
    return %c0_i32, %c0_i32_0 : i32, i32
  }
  func.func @transform_3(%arg0: i32, %arg1: i32) -> (i32, i32) {
    %c0_i32 = arith.constant 0 : i32
    %c0_i32_0 = arith.constant 0 : i32
    %c0_i32_1 = arith.constant 0 : i32
    return %c0_i32, %c0_i32_0 : i32, i32
  }
  func.func @transform_4(%arg0: i32, %arg1: i32) -> (i32, i32) {
    %c0_i32 = arith.constant 0 : i32
    %c0_i32_0 = arith.constant 0 : i32
    %c0_i32_1 = arith.constant 0 : i32
    return %c0_i32, %c0_i32_0 : i32, i32
  }
  func.func @transform_5(%arg0: i32, %arg1: i32) -> (i32, i32, i32) {
    %c0_i32 = arith.constant 0 : i32
    %c0_i32_0 = arith.constant 0 : i32
    return %arg1, %arg0, %c0_i32 : i32, i32, i32
  }
}

</mosaic_0001>

<llo_original>
// kernel: tpu_custom_call.1
$region0: #{tpu_custom_call.1}
  #allocation0 [shape = 'u32[]', space=smem, size = 0x4, offset = 0x4, fixed_abs, tag = 'smem constant byte address 0x4 - core index']
  #allocation1 [shape = 'u32[72,128]{1,0:T(1,128)}', space=vmem, size = 0x9000, scoped, tag = 'internal scratch']
  #allocation2 [shape = 'f32[8,128]{1,0:T(8,128)}', space=vmem, size = 0x1000, scoped, tag = 'scratch operand']
  #allocation3 [shape = 'f32[8,8,128]{2,1,0:T(8,128)}', space=vmem, size = 0x8000, scoped, tag = 'scratch operand']
  %s0 = inlined_call_operand.vmem [shape: f32[8,8,4], index: 0, kind: input, shape index: {}]
  %s1 = inlined_call_operand.vmem [shape: f32[8,128], index: 1, kind: input, shape index: {}]
  %s2 = inlined_call_operand.vmem [shape: f32[4,128], index: 2, kind: input, shape index: {}]
  %s3 = inlined_call_operand.hbm [shape: f32[128,128], index: 3, kind: input, shape index: {}]
  %s4 = inlined_call_operand.vmem [shape: f32[1,128], index: 4, kind: input, shape index: {}]
  %s5 = inlined_call_operand.hbm [shape: f32[8,8,128], index: 5, kind: output, shape index: {}]
  %s6 = sld [smem:[#allocation0]]
  $region38: #{tpu_custom_call.1} parent=0
    _
  %s8 = ssub.s32 1, %s6
  %s9 = scalar_select 0, %s8, %s6
  $region1: #{tpu_custom_call.1} parent=0
    #allocation4 [shape = 'u8[65536]{0}', space=vmem, size = 0x10000, scoped, tag = 'input window, operand 3, single buffered']
    #allocation5 [shape = 's32[1]{0}', space=sflag, size = 0x4, scoped, tag = 'scoped memory for tpu_custom_call.1']
    #allocation6 [shape = 's32[1]{0}', space=sflag, size = 0x4, scoped, tag = 'scoped memory for tpu_custom_call.1']
    #allocation7 [shape = 'u8[32768]{0}', space=vmem, size = 0x8000, scoped, tag = 'output window, operand 0, single buffered']
    %10 = vsyncpa [#allocation5], 0
    %11 = vsyncpa [#allocation6], 0
    // Predicated region
    $region2: #{tpu_custom_call.1} parent=1 // pred_check
      _
    $region3: #{tpu_custom_call.1} parent=1 // pred_check_branch
      %13 = sbr.rel (0) target = $region5
    $region4: #{tpu_custom_call.1} parent=1 // pred_region
      _
    $region5: #{tpu_custom_call.1} parent=1 // pred_fallthru
      _
    // Predicated region
    $region6: #{tpu_custom_call.1} parent=1 // pred_check
      _
    $region7: #{tpu_custom_call.1} parent=1 // pred_check_branch
      %15 = sbr.rel (0) target = $region9
    $region8: #{tpu_custom_call.1} parent=1 // pred_region
      _
    $region9: #{tpu_custom_call.1} parent=1 // pred_fallthru
      _
    // Predicated region
    $region10: #{tpu_custom_call.1} parent=1 // pred_check
      _
    $region11: #{tpu_custom_call.1} parent=1 // pred_check_branch
      %17 = sbr.rel (0) target = $region13
    $region12: #{tpu_custom_call.1} parent=1 // pred_region
      _
    $region13: #{tpu_custom_call.1} parent=1 // pred_fallthru
      _
    // Predicated region
    $region14: #{tpu_custom_call.1} parent=1 // pred_check
      _
    $region15: #{tpu_custom_call.1} parent=1 // pred_check_branch
      %19 = sbr.rel (0) target = $region17
    $region16: #{tpu_custom_call.1} parent=1 // pred_region
      %21 = vsyncadd [#allocation5], 0
      %s22 = sshll.u32 %s3, 4
      %s23 = int_to_ptr.hbm [resolvable:$true] %s22
      %s24 = sshll.u32 [#allocation4], 4
      %s25 = int_to_ptr.vmem [resolvable:$true] %s24
      %30 = dma.hbm_to_vmem [thread:$0]  %s23, 2048, %s25, [#allocation5], 128, 128, 8
    $region17: #{tpu_custom_call.1} parent=1 // pred_fallthru
      _
    // Predicated region
    $region18: #{tpu_custom_call.1} parent=1 // pred_check
      _
    $region19: #{tpu_custom_call.1} parent=1 // pred_check_branch
      %32 = sbr.rel (0) target = $region21
    $region20: #{tpu_custom_call.1} parent=1 // pred_region
      _
    $region21: #{tpu_custom_call.1} parent=1 // pred_fallthru
      _
    // Predicated region
    $region22: #{tpu_custom_call.1} parent=1 // pred_check
      _
    $region23: #{tpu_custom_call.1} parent=1 // pred_check_branch
      %34 = sbr.rel (0) target = $region25
    $region24: #{tpu_custom_call.1} parent=1 // pred_region
      %36 = dma.done [#allocation5], 2048
    $region25: #{tpu_custom_call.1} parent=1 // pred_fallthru
      _
    %p37 = scmp.eq.s32.totalorder 0, 0
    // Predicated region
    $region26: #{tpu_custom_call.1} parent=1 // pred_check
      %p38 = pneg %p37
    $region27: #{tpu_custom_call.1} parent=1 // pred_check_branch
      %40 = sbr.rel (%p38) target = $region29
    $region28: #{tpu_custom_call.1} parent=1 // pred_region
      %v41 = vld [vmem:[%s1] sm:$0xff]
      %42 = vst [vmem:[#allocation2] sm:$0xff] %v41
    $region29: #{tpu_custom_call.1} parent=1 // pred_fallthru
      _
    %v43 = vld [vmem:[%s0] sm:$0xff]
    %v44 = vld [vmem:[%s0 + $0x8] sm:$0xff]
    %v45 = vld [vmem:[%s0 + $0x10] sm:$0xff]
    %v46 = vld [vmem:[%s0 + $0x18] sm:$0xff]
    %v47 = vld [vmem:[%s0 + $0x20] sm:$0xff]
    %v48 = vld [vmem:[%s0 + $0x28] sm:$0xff]
    %v49 = vld [vmem:[%s0 + $0x30] sm:$0xff]
    %v50 = vld [vmem:[%s0 + $0x38] sm:$0xff]
    %v51 = vld [vmem:[%s2] sm:$0xf]
    %v52 = vld [vmem:[%s4] sm:$0x1]
    %v54 = vperm.slane %v52, 0
    %vm56 = vcmask 31744
    %v58 = vsel %vm56, %v43, 0
    %v61 = vsel %vm56, %v44, 0
    %v64 = vsel %vm56, %v45, 0
    %v67 = vsel %vm56, %v46, 0
    %v70 = vsel %vm56, %v47, 0
    %v73 = vsel %vm56, %v48, 0
    %v76 = vsel %vm56, %v49, 0
    %v79 = vsel %vm56, %v50, 0
    %vm81 = vcmask 1043456
    %v83 = vsel %vm81, %v51, 0
    %85 = vmatpush.msra.mxu0 0.0
    %86 = vmatpush.msra.mxu0 0.0
    %87 = vmatpush.msra.mxu0 0.0
    %88 = vmatpush.msra.mxu0 0.0
    %89 = vmatpush.msra.mxu0 0.0
    %90 = vmatpush.msra.mxu0 0.0
    %91 = vmatpush.msra.mxu0 0.0
    %92 = vmatpush.msra.mxu0 0.0
    %93 = vmatpush.msra.mxu0 0.0
    %94 = vmatpush.msra.mxu0 0.0
    %95 = vmatpush.msra.mxu0 0.0
    %96 = vmatpush.msra.mxu0 0.0
    %97 = vmatpush.msra.mxu0 0.0
    %98 = vmatpush.msra.mxu0 0.0
    %99 = vmatpush.msra.mxu0 0.0
    %100 = vmatpush.msra.mxu0 %v83
    %101 = vmatmul.f32.gmra.mxu0 %v58
    %v102 = vpop.f32.mrf.mxu0
    %v103 = vadd.f32 %v54, %v102
    %104 = vmatmul.f32.gmra.mxu0 %v61
    %v105 = vpop.f32.mrf.mxu0
    %v106 = vadd.f32 %v54, %v105
    %107 = vmatmul.f32.gmra.mxu0 %v64
    %v108 = vpop.f32.mrf.mxu0
    %v109 = vadd.f32 %v54, %v108
    %110 = vmatmul.f32.gmra.mxu0 %v67
    %v111 = vpop.f32.mrf.mxu0
    %v112 = vadd.f32 %v54, %v111
    %113 = vmatmul.f32.gmra.mxu0 %v70
    %v114 = vpop.f32.mrf.mxu0
    %v115 = vadd.f32 %v54, %v114
    %116 = vmatmul.f32.gmra.mxu0 %v73
    %v117 = vpop.f32.mrf.mxu0
    %v118 = vadd.f32 %v54, %v117
    %119 = vmatmul.f32.gmra.mxu0 %v76
    %v120 = vpop.f32.mrf.mxu0
    %v121 = vadd.f32 %v54, %v120
    %122 = vmatmul.f32.gmra.mxu0 %v79
    %v123 = vpop.f32.mrf.mxu0
    %v124 = vadd.f32 %v54, %v123
    %125 = vdwg.mxu0
    %126 = vst [vmem:[#allocation3] sm:$0xff] %v103
    %127 = vst [vmem:[#allocation3 + $0x8] sm:$0xff] %v106
    %128 = vst [vmem:[#allocation3 + $0x10] sm:$0xff] %v109
    %129 = vst [vmem:[#allocation3 + $0x18] sm:$0xff] %v112
    %130 = vst [vmem:[#allocation3 + $0x20] sm:$0xff] %v115
    %131 = vst [vmem:[#allocation3 + $0x28] sm:$0xff] %v118
    %132 = vst [vmem:[#allocation3 + $0x30] sm:$0xff] %v121
    %133 = vst [vmem:[#allocation3 + $0x38] sm:$0xff] %v124
    %v134 = vld [vmem:[#allocation2] sm:$0xff]
    %v135 = vld [vmem:[#allocation4] sm:$0xff]
    %v136 = vld [vmem:[#allocation4 + $0x8] sm:$0xff]
    %v137 = vld [vmem:[#allocation4 + $0x10] sm:$0xff]
    %v138 = vld [vmem:[#allocation4 + $0x18] sm:$0xff]
    %v139 = vld [vmem:[#allocation4 + $0x20] sm:$0xff]
    %v140 = vld [vmem:[#allocation4 + $0x28] sm:$0xff]
    %v141 = vld [vmem:[#allocation4 + $0x30] sm:$0xff]
    %v142 = vld [vmem:[#allocation4 + $0x38] sm:$0xff]
    %v143 = vld [vmem:[#allocation4 + $0x40] sm:$0xff]
    %v144 = vld [vmem:[#allocation4 + $0x48] sm:$0xff]
    %v145 = vld [vmem:[#allocation4 + $0x50] sm:$0xff]
    %v146 = vld [vmem:[#allocation4 + $0x58] sm:$0xff]
    %v147 = vld [vmem:[#allocation4 + $0x60] sm:$0xff]
    %v148 = vld [vmem:[#allocation4 + $0x68] sm:$0xff]
    %v149 = vld [vmem:[#allocation4 + $0x70] sm:$0xff]
    %v150 = vld [vmem:[#allocation4 + $0x78] sm:$0xff]
    %151 = vmatpush.msra.mxu0 %v150
    %152 = vmatpush.msra.mxu0 %v149
    %153 = vmatpush.msra.mxu0 %v148
    %154 = vmatpush.msra.mxu0 %v147
    %155 = vmatpush.msra.mxu0 %v146
    %156 = vmatpush.msra.mxu0 %v145
    %157 = vmatpush.msra.mxu0 %v144
    %158 = vmatpush.msra.mxu0 %v143
    %159 = vmatpush.msra.mxu0 %v142
    %160 = vmatpush.msra.mxu0 %v141
    %161 = vmatpush.msra.mxu0 %v140
    %162 = vmatpush.msra.mxu0 %v139
    %163 = vmatpush.msra.mxu0 %v138
    %164 = vmatpush.msra.mxu0 %v137
    %165 = vmatpush.msra.mxu0 %v136
    %166 = vmatpush.msra.mxu0 %v135
    %167 = vmatmul.f32.gmra.mxu0 %v134
    %v168 = vpop.f32.mrf.mxu0
    %v169 = vadd.f32 0.0, %v168
    %170 = vdwg.mxu0
    %v171 = vld [vmem:[#allocation3] sm:$0xff]
    %v172 = vadd.f32 %v171, %v169
    %v173 = vtanh.pop %v172
    %174 = vst [vmem:[#allocation7] sm:$0xff] %v173
    %v175 = vld [vmem:[#allocation4] sm:$0xff]
    %v176 = vld [vmem:[#allocation4 + $0x8] sm:$0xff]
    %v177 = vld [vmem:[#allocation4 + $0x10] sm:$0xff]
    %v178 = vld [vmem:[#allocation4 + $0x18] sm:$0xff]
    %v179 = vld [vmem:[#allocation4 + $0x20] sm:$0xff]
    %v180 = vld [vmem:[#allocation4 + $0x28] sm:$0xff]
    %v181 = vld [vmem:[#allocation4 + $0x30] sm:$0xff]
    %v182 = vld [vmem:[#allocation4 + $0x38] sm:$0xff]
    %v183 = vld [vmem:[#allocation4 + $0x40] sm:$0xff]
    %v184 = vld [vmem:[#allocation4 + $0x48] sm:$0xff]
    %v185 = vld [vmem:[#allocation4 + $0x50] sm:$0xff]
    %v186 = vld [vmem:[#allocation4 + $0x58] sm:$0xff]
    %v187 = vld [vmem:[#allocation4 + $0x60] sm:$0xff]
    %v188 = vld [vmem:[#allocation4 + $0x68] sm:$0xff]
    %v189 = vld [vmem:[#allocation4 + $0x70] sm:$0xff]
    %v190 = vld [vmem:[#allocation4 + $0x78] sm:$0xff]
    %191 = vmatpush.msra.mxu0 %v190
    %192 = vmatpush.msra.mxu0 %v189
    %193 = vmatpush.msra.mxu0 %v188
    %194 = vmatpush.msra.mxu0 %v187
    %195 = vmatpush.msra.mxu0 %v186
    %196 = vmatpush.msra.mxu0 %v185
    %197 = vmatpush.msra.mxu0 %v184
    %198 = vmatpush.msra.mxu0 %v183
    %199 = vmatpush.msra.mxu0 %v182
    %200 = vmatpush.msra.mxu0 %v181
    %201 = vmatpush.msra.mxu0 %v180
    %202 = vmatpush.msra.mxu0 %v179
    %203 = vmatpush.msra.mxu0 %v178
    %204 = vmatpush.msra.mxu0 %v177
    %205 = vmatpush.msra.mxu0 %v176
    %206 = vmatpush.msra.mxu0 %v175
    %207 = vmatmul.f32.gmra.mxu0 %v173
    %v208 = vpop.f32.mrf.mxu0
    %v209 = vadd.f32 0.0, %v208
    %210 = vdwg.mxu0
    %s211 = scalar_lea.vmem [#allocation3], 8
    %v212 = vld [vmem:[%s211] sm:$0xff]
    %v213 = vadd.f32 %v212, %v209
    %v214 = vtanh.pop %v213
    %s215 = scalar_lea.vmem [#allocation7], 8
    %216 = vst [vmem:[%s215] sm:$0xff] %v214
    %v217 = vld [vmem:[#allocation4] sm:$0xff]
    %v218 = vld [vmem:[#allocation4 + $0x8] sm:$0xff]
    %v219 = vld [vmem:[#allocation4 + $0x10] sm:$0xff]
    %v220 = vld [vmem:[#allocation4 + $0x18] sm:$0xff]
    %v221 = vld [vmem:[#allocation4 + $0x20] sm:$0xff]
    %v222 = vld [vmem:[#allocation4 + $0x28] sm:$0xff]
    %v223 = vld [vmem:[#allocation4 + $0x30] sm:$0xff]
    %v224 = vld [vmem:[#allocation4 + $0x38] sm:$0xff]
    %v225 = vld [vmem:[#allocation4 + $0x40] sm:$0xff]
    %v226 = vld [vmem:[#allocation4 + $0x48] sm:$0xff]
    %v227 = vld [vmem:[#allocation4 + $0x50] sm:$0xff]
    %v228 = vld [vmem:[#allocation4 + $0x58] sm:$0xff]
    %v229 = vld [vmem:[#allocation4 + $0x60] sm:$0xff]
    %v230 = vld [vmem:[#allocation4 + $0x68] sm:$0xff]
    %v231 = vld [vmem:[#allocation4 + $0x70] sm:$0xff]
    %v232 = vld [vmem:[#allocation4 + $0x78] sm:$0xff]
    %233 = vmatpush.msra.mxu0 %v232
    %234 = vmatpush.msra.mxu0 %v231
    %235 = vmatpush.msra.mxu0 %v230
    %236 = vmatpush.msra.mxu0 %v229
    %237 = vmatpush.msra.mxu0 %v228
    %238 = vmatpush.msra.mxu0 %v227
    %239 = vmatpush.msra.mxu0 %v226
    %240 = vmatpush.msra.mxu0 %v225
    %241 = vmatpush.msra.mxu0 %v224
    %242 = vmatpush.msra.mxu0 %v223
    %243 = vmatpush.msra.mxu0 %v222
    %244 = vmatpush.msra.mxu0 %v221
    %245 = vmatpush.msra.mxu0 %v220
    %246 = vmatpush.msra.mxu0 %v219
    %247 = vmatpush.msra.mxu0 %v218
    %248 = vmatpush.msra.mxu0 %v217
    %249 = vmatmul.f32.gmra.mxu0 %v214
    %v250 = vpop.f32.mrf.mxu0
    %v251 = vadd.f32 0.0, %v250
    %252 = vdwg.mxu0
    %s253 = scalar_lea.vmem [#allocation3], 16
    %v254 = vld [vmem:[%s253] sm:$0xff]
    %v255 = vadd.f32 %v254, %v251
    %v256 = vtanh.pop %v255
    %s257 = scalar_lea.vmem [#allocation7], 16
    %258 = vst [vmem:[%s257] sm:$0xff] %v256
    %v259 = vld [vmem:[#allocation4] sm:$0xff]
    %v260 = vld [vmem:[#allocation4 + $0x8] sm:$0xff]
    %v261 = vld [vmem:[#allocation4 + $0x10] sm:$0xff]
    %v262 = vld [vmem:[#allocation4 + $0x18] sm:$0xff]
    %v263 = vld [vmem:[#allocation4 + $0x20] sm:$0xff]
    %v264 = vld [vmem:[#allocation4 + $0x28] sm:$0xff]
    %v265 = vld [vmem:[#allocation4 + $0x30] sm:$0xff]
    %v266 = vld [vmem:[#allocation4 + $0x38] sm:$0xff]
    %v267 = vld [vmem:[#allocation4 + $0x40] sm:$0xff]
    %v268 = vld [vmem:[#allocation4 + $0x48] sm:$0xff]
    %v269 = vld [vmem:[#allocation4 + $0x50] sm:$0xff]
    %v270 = vld [vmem:[#allocation4 + $0x58] sm:$0xff]
    %v271 = vld [vmem:[#allocation4 + $0x60] sm:$0xff]
    %v272 = vld [vmem:[#allocation4 + $0x68] sm:$0xff]
    %v273 = vld [vmem:[#allocation4 + $0x70] sm:$0xff]
    %v274 = vld [vmem:[#allocation4 + $0x78] sm:$0xff]
    %275 = vmatpush.msra.mxu0 %v274
    %276 = vmatpush.msra.mxu0 %v273
    %277 = vmatpush.msra.mxu0 %v272
    %278 = vmatpush.msra.mxu0 %v271
    %279 = vmatpush.msra.mxu0 %v270
    %280 = vmatpush.msra.mxu0 %v269
    %281 = vmatpush.msra.mxu0 %v268
    %282 = vmatpush.msra.mxu0 %v267
    %283 = vmatpush.msra.mxu0 %v266
    %284 = vmatpush.msra.mxu0 %v265
    %285 = vmatpush.msra.mxu0 %v264
    %286 = vmatpush.msra.mxu0 %v263
    %287 = vmatpush.msra.mxu0 %v262
    %288 = vmatpush.msra.mxu0 %v261
    %289 = vmatpush.msra.mxu0 %v260
    %290 = vmatpush.msra.mxu0 %v259
    %291 = vmatmul.f32.gmra.mxu0 %v256
    %v292 = vpop.f32.mrf.mxu0
    %v293 = vadd.f32 0.0, %v292
    %294 = vdwg.mxu0
    %s295 = scalar_lea.vmem [#allocation3], 24
    %v296 = vld [vmem:[%s295] sm:$0xff]
    %v297 = vadd.f32 %v296, %v293
    %v298 = vtanh.pop %v297
    %s299 = scalar_lea.vmem [#allocation7], 24
    %300 = vst [vmem:[%s299] sm:$0xff] %v298
    %v301 = vld [vmem:[#allocation4] sm:$0xff]
    %v302 = vld [vmem:[#allocation4 + $0x8] sm:$0xff]
    %v303 = vld [vmem:[#allocation4 + $0x10] sm:$0xff]
    %v304 = vld [vmem:[#allocation4 + $0x18] sm:$0xff]
    %v305 = vld [vmem:[#allocation4 + $0x20] sm:$0xff]
    %v306 = vld [vmem:[#allocation4 + $0x28] sm:$0xff]
    %v307 = vld [vmem:[#allocation4 + $0x30] sm:$0xff]
    %v308 = vld [vmem:[#allocation4 + $0x38] sm:$0xff]
    %v309 = vld [vmem:[#allocation4 + $0x40] sm:$0xff]
    %v310 = vld [vmem:[#allocation4 + $0x48] sm:$0xff]
    %v311 = vld [vmem:[#allocation4 + $0x50] sm:$0xff]
    %v312 = vld [vmem:[#allocation4 + $0x58] sm:$0xff]
    %v313 = vld [vmem:[#allocation4 + $0x60] sm:$0xff]
    %v314 = vld [vmem:[#allocation4 + $0x68] sm:$0xff]
    %v315 = vld [vmem:[#allocation4 + $0x70] sm:$0xff]
    %v316 = vld [vmem:[#allocation4 + $0x78] sm:$0xff]
    %317 = vmatpush.msra.mxu0 %v316
    %318 = vmatpush.msra.mxu0 %v315
    %319 = vmatpush.msra.mxu0 %v314
    %320 = vmatpush.msra.mxu0 %v313
    %321 = vmatpush.msra.mxu0 %v312
    %322 = vmatpush.msra.mxu0 %v311
    %323 = vmatpush.msra.mxu0 %v310
    %324 = vmatpush.msra.mxu0 %v309
    %325 = vmatpush.msra.mxu0 %v308
    %326 = vmatpush.msra.mxu0 %v307
    %327 = vmatpush.msra.mxu0 %v306
    %328 = vmatpush.msra.mxu0 %v305
    %329 = vmatpush.msra.mxu0 %v304
    %330 = vmatpush.msra.mxu0 %v303
    %331 = vmatpush.msra.mxu0 %v302
    %332 = vmatpush.msra.mxu0 %v301
    %333 = vmatmul.f32.gmra.mxu0 %v298
    %v334 = vpop.f32.mrf.mxu0
    %v335 = vadd.f32 0.0, %v334
    %336 = vdwg.mxu0
    %s337 = scalar_lea.vmem [#allocation3], 32
    %v338 = vld [vmem:[%s337] sm:$0xff]
    %v339 = vadd.f32 %v338, %v335
    %v340 = vtanh.pop %v339
    %s341 = scalar_lea.vmem [#allocation7], 32
    %342 = vst [vmem:[%s341] sm:$0xff] %v340
    %v343 = vld [vmem:[#allocation4] sm:$0xff]
    %v344 = vld [vmem:[#allocation4 + $0x8] sm:$0xff]
    %v345 = vld [vmem:[#allocation4 + $0x10] sm:$0xff]
    %v346 = vld [vmem:[#allocation4 + $0x18] sm:$0xff]
    %v347 = vld [vmem:[#allocation4 + $0x20] sm:$0xff]
    %v348 = vld [vmem:[#allocation4 + $0x28] sm:$0xff]
    %v349 = vld [vmem:[#allocation4 + $0x30] sm:$0xff]
    %v350 = vld [vmem:[#allocation4 + $0x38] sm:$0xff]
    %v351 = vld [vmem:[#allocation4 + $0x40] sm:$0xff]
    %v352 = vld [vmem:[#allocation4 + $0x48] sm:$0xff]
    %v353 = vld [vmem:[#allocation4 + $0x50] sm:$0xff]
    %v354 = vld [vmem:[#allocation4 + $0x58] sm:$0xff]
    %v355 = vld [vmem:[#allocation4 + $0x60] sm:$0xff]
    %v356 = vld [vmem:[#allocation4 + $0x68] sm:$0xff]
    %v357 = vld [vmem:[#allocation4 + $0x70] sm:$0xff]
    %v358 = vld [vmem:[#allocation4 + $0x78] sm:$0xff]
    %359 = vmatpush.msra.mxu0 %v358
    %360 = vmatpush.msra.mxu0 %v357
    %361 = vmatpush.msra.mxu0 %v356
    %362 = vmatpush.msra.mxu0 %v355
    %363 = vmatpush.msra.mxu0 %v354
    %364 = vmatpush.msra.mxu0 %v353
    %365 = vmatpush.msra.mxu0 %v352
    %366 = vmatpush.msra.mxu0 %v351
    %367 = vmatpush.msra.mxu0 %v350
    %368 = vmatpush.msra.mxu0 %v349
    %369 = vmatpush.msra.mxu0 %v348
    %370 = vmatpush.msra.mxu0 %v347
    %371 = vmatpush.msra.mxu0 %v346
    %372 = vmatpush.msra.mxu0 %v345
    %373 = vmatpush.msra.mxu0 %v344
    %374 = vmatpush.msra.mxu0 %v343
    %375 = vmatmul.f32.gmra.mxu0 %v340
    %v376 = vpop.f32.mrf.mxu0
    %v377 = vadd.f32 0.0, %v376
    %378 = vdwg.mxu0
    %s379 = scalar_lea.vmem [#allocation3], 40
    %v380 = vld [vmem:[%s379] sm:$0xff]
    %v381 = vadd.f32 %v380, %v377
    %v382 = vtanh.pop %v381
    %s383 = scalar_lea.vmem [#allocation7], 40
    %384 = vst [vmem:[%s383] sm:$0xff] %v382
    %v385 = vld [vmem:[#allocation4] sm:$0xff]
    %v386 = vld [vmem:[#allocation4 + $0x8] sm:$0xff]
    %v387 = vld [vmem:[#allocation4 + $0x10] sm:$0xff]
    %v388 = vld [vmem:[#allocation4 + $0x18] sm:$0xff]
    %v389 = vld [vmem:[#allocation4 + $0x20] sm:$0xff]
    %v390 = vld [vmem:[#allocation4 + $0x28] sm:$0xff]
    %v391 = vld [vmem:[#allocation4 + $0x30] sm:$0xff]
    %v392 = vld [vmem:[#allocation4 + $0x38] sm:$0xff]
    %v393 = vld [vmem:[#allocation4 + $0x40] sm:$0xff]
    %v394 = vld [vmem:[#allocation4 + $0x48] sm:$0xff]
    %v395 = vld [vmem:[#allocation4 + $0x50] sm:$0xff]
    %v396 = vld [vmem:[#allocation4 + $0x58] sm:$0xff]
    %v397 = vld [vmem:[#allocation4 + $0x60] sm:$0xff]
    %v398 = vld [vmem:[#allocation4 + $0x68] sm:$0xff]
    %v399 = vld [vmem:[#allocation4 + $0x70] sm:$0xff]
    %v400 = vld [vmem:[#allocation4 + $0x78] sm:$0xff]
    %401 = vmatpush.msra.mxu0 %v400
    %402 = vmatpush.msra.mxu0 %v399
    %403 = vmatpush.msra.mxu0 %v398
    %404 = vmatpush.msra.mxu0 %v397
    %405 = vmatpush.msra.mxu0 %v396
    %406 = vmatpush.msra.mxu0 %v395
    %407 = vmatpush.msra.mxu0 %v394
    %408 = vmatpush.msra.mxu0 %v393
    %409 = vmatpush.msra.mxu0 %v392
    %410 = vmatpush.msra.mxu0 %v391
    %411 = vmatpush.msra.mxu0 %v390
    %412 = vmatpush.msra.mxu0 %v389
    %413 = vmatpush.msra.mxu0 %v388
    %414 = vmatpush.msra.mxu0 %v387
    %415 = vmatpush.msra.mxu0 %v386
    %416 = vmatpush.msra.mxu0 %v385
    %417 = vmatmul.f32.gmra.mxu0 %v382
    %v418 = vpop.f32.mrf.mxu0
    %v419 = vadd.f32 0.0, %v418
    %420 = vdwg.mxu0
    %s421 = scalar_lea.vmem [#allocation3], 48
    %v422 = vld [vmem:[%s421] sm:$0xff]
    %v423 = vadd.f32 %v422, %v419
    %v424 = vtanh.pop %v423
    %s425 = scalar_lea.vmem [#allocation7], 48
    %426 = vst [vmem:[%s425] sm:$0xff] %v424
    %v427 = vld [vmem:[#allocation4] sm:$0xff]
    %v428 = vld [vmem:[#allocation4 + $0x8] sm:$0xff]
    %v429 = vld [vmem:[#allocation4 + $0x10] sm:$0xff]
    %v430 = vld [vmem:[#allocation4 + $0x18] sm:$0xff]
    %v431 = vld [vmem:[#allocation4 + $0x20] sm:$0xff]
    %v432 = vld [vmem:[#allocation4 + $0x28] sm:$0xff]
    %v433 = vld [vmem:[#allocation4 + $0x30] sm:$0xff]
    %v434 = vld [vmem:[#allocation4 + $0x38] sm:$0xff]
    %v435 = vld [vmem:[#allocation4 + $0x40] sm:$0xff]
    %v436 = vld [vmem:[#allocation4 + $0x48] sm:$0xff]
    %v437 = vld [vmem:[#allocation4 + $0x50] sm:$0xff]
    %v438 = vld [vmem:[#allocation4 + $0x58] sm:$0xff]
    %v439 = vld [vmem:[#allocation4 + $0x60] sm:$0xff]
    %v440 = vld [vmem:[#allocation4 + $0x68] sm:$0xff]
    %v441 = vld [vmem:[#allocation4 + $0x70] sm:$0xff]
    %v442 = vld [vmem:[#allocation4 + $0x78] sm:$0xff]
    %443 = vmatpush.msra.mxu0 %v442
    %444 = vmatpush.msra.mxu0 %v441
    %445 = vmatpush.msra.mxu0 %v440
    %446 = vmatpush.msra.mxu0 %v439
    %447 = vmatpush.msra.mxu0 %v438
    %448 = vmatpush.msra.mxu0 %v437
    %449 = vmatpush.msra.mxu0 %v436
    %450 = vmatpush.msra.mxu0 %v435
    %451 = vmatpush.msra.mxu0 %v434
    %452 = vmatpush.msra.mxu0 %v433
    %453 = vmatpush.msra.mxu0 %v432
    %454 = vmatpush.msra.mxu0 %v431
    %455 = vmatpush.msra.mxu0 %v430
    %456 = vmatpush.msra.mxu0 %v429
    %457 = vmatpush.msra.mxu0 %v428
    %458 = vmatpush.msra.mxu0 %v427
    %459 = vmatmul.f32.gmra.mxu0 %v424
    %v460 = vpop.f32.mrf.mxu0
    %v461 = vadd.f32 0.0, %v460
    %462 = vdwg.mxu0
    %s463 = scalar_lea.vmem [#allocation3], 56
    %v464 = vld [vmem:[%s463] sm:$0xff]
    %v465 = vadd.f32 %v464, %v461
    %v466 = vtanh.pop %v465
    %s467 = scalar_lea.vmem [#allocation7], 56
    %468 = vst [vmem:[%s467] sm:$0xff] %v466
    %469 = vst [vmem:[#allocation2] sm:$0xff] %v466
    // Predicated region
    $region30: #{tpu_custom_call.1} parent=1 // pred_check
      _
    $region31: #{tpu_custom_call.1} parent=1 // pred_check_branch
      %471 = sbr.rel (0) target = $region33
    $region32: #{tpu_custom_call.1} parent=1 // pred_region
      %473 = vsyncadd [#allocation6], 0
      %s474 = sshll.u32 [#allocation7], 4
      %s475 = int_to_ptr.vmem [resolvable:$true] %s474
      %s476 = sshll.u32 %s5, 4
      %s477 = int_to_ptr.hbm [resolvable:$true] %s476
      %482 = dma.vmem_to_hbm [thread:$0]  %s475, 1024, %s477, [#allocation6], 128, 128, 8
    $region33: #{tpu_custom_call.1} parent=1 // pred_fallthru
      _
    // Predicated region
    $region34: #{tpu_custom_call.1} parent=1 // pred_check
      _
    $region35: #{tpu_custom_call.1} parent=1 // pred_check_branch
      %484 = sbr.rel (0) target = $region37
    $region36: #{tpu_custom_call.1} parent=1 // pred_region
      %486 = dma.done [#allocation6], 1024
    $region37: #{tpu_custom_call.1} parent=1 // pred_fallthru
      _
    %487 = vsyncpa [#allocation5], 1
    %488 = vsyncpa [#allocation6], 1

</llo_original>
